<compile_context>
chip_gen: v5e
topology: v5e:2x2
jax: 0.10.0
libtpu: 0.0.40
codegen_flags: <defaults>
</compile_context>

<pallas_src>
import functools

import jax
import jax.numpy as jnp
from jax.experimental import pallas as pl
from jax.experimental.pallas import tpu as pltpu

_EPS = 1e-16
_LANE = 128


def _kl_kernel(pred_ref, tgt_ref, tmat_ref, out_ref, acc_ref, *, n_rows, r_tile, eps):
    core = pl.program_id(0)
    b = pl.program_id(1)
    j = pl.program_id(2)
    n_b = pl.num_programs(1)
    tiles_per_core = pl.num_programs(2)

    @pl.when(jnp.logical_and(b == 0, j == 0))
    def _():
        acc_ref[...] = jnp.zeros_like(acc_ref)

    pred = pred_ref[...].astype(jnp.float32)   # (Cin,  R_TILE, 128) pixels sublane+lane dense
    tgt = tgt_ref[...].astype(jnp.float32)     # (Cout, R_TILE, 128)
    cin = pred.shape[0]
    cout = tgt.shape[0]
    lane = pred.shape[-1]

    # One-hot-selected reduced probability:
    #   red_sel = sum_k t_k * (sum_c M[c,k] * p_c)   (== r_{k*} for strictly one-hot t)
    # tgt_sum  = sum_k t_k (1 for valid one-hot pixels, 0 for zero-padded pixels).
    red_sel = jnp.zeros((r_tile, lane), jnp.float32)
    tgt_sum = jnp.zeros((r_tile, lane), jnp.float32)
    for k in range(cout):
        red_k = tmat_ref[0, k] * pred[0]
        for c in range(1, cin):
            red_k = red_k + tmat_ref[c, k] * pred[c]
        red_sel = red_sel + tgt[k] * red_k
        tgt_sum = tgt_sum + tgt[k]

    red_sel = jnp.maximum(red_sel, 0.0)              # robustness against garbage OOB rows
    # ONE transcendental per pixel; <= 0 for valid pixels, exactly 0 for padded pixels.
    kl = tgt_sum * jnp.log(red_sel + eps)            # (R_TILE, 128)

    def _fold_accumulate(vals):
        # Fold (R_TILE, 128) into the vreg-sized accumulator with a VPU add tree.
        if r_tile % 8 == 0 and r_tile > 8:
            parts = [vals[g * 8:(g + 1) * 8, :] for g in range(r_tile // 8)]
            while len(parts) > 1:
                nxt = [parts[i] + parts[i + 1] for i in range(0, len(parts) - 1, 2)]
                if len(parts) % 2:
                    nxt.append(parts[-1])
                parts = nxt
            vals = parts[0]
        acc_ref[...] += vals

    g_tile = core * tiles_per_core + j               # unclamped global row-tile index
    is_ragged = (g_tile + 1) * r_tile > n_rows       # ragged last tile or clamped duplicate

    @pl.when(jnp.logical_not(is_ragged))
    def _():
        _fold_accumulate(kl)                         # fast path: no mask on interior tiles

    @pl.when(is_ragged)
    def _():
        row = jax.lax.broadcasted_iota(jnp.int32, (r_tile, lane), 0)
        valid = (g_tile * r_tile + row) < n_rows
        _fold_accumulate(jnp.where(valid, kl, 0.0))

    @pl.when(jnp.logical_and(b == n_b - 1, j == tiles_per_core - 1))
    def _():
        total = jnp.sum(acc_ref[...])                # single XLU reduce per core
        out_ref[...] = total * jnp.ones(out_ref.shape, jnp.float32)


def adaptive_over_segmented_loss(predict_simplex, onehot_target, translate_matrix,
                                 entropy_decay=0.001, r_tile=1024, n_cores=1):
    """Forward pass of AdaptiveOverSegmentedLoss.

    predict_simplex : (B, Cin, H, W)  simplex over dim 1 (f32 or bf16; math runs in f32)
    onehot_target   : (B, Cout, H, W) strictly one-hot over dim 1
    translate_matrix: (Cin, Cout)     raw parameter (softmax over dim 1 applied here)
    r_tile          : rows of 128 pixels per grid step (131072 px at the default 1024)
    n_cores         : 1 for single-TensorCore chips (v5e/v6e); 2 to shard pixel tiles
                      across the two TensorCores of a megacore chip (v7x).

    NOTE: the KL simplification is exact only for strictly one-hot targets (the PyTorch
    module asserts one_hot(onehot_target)); soft / label-smoothed targets are unsupported.
    """
    B, Cin, H, W = predict_simplex.shape
    Cout = onehot_target.shape[1]
    assert onehot_target.shape == (B, Cout, H, W)
    assert translate_matrix.shape == (Cin, Cout)
    HW = H * W

    p_mat = jax.nn.softmax(translate_matrix.astype(jnp.float32), axis=1)   # (Cin, Cout)

    # Pixels on a dense (rows, 128) grid. The reshape is free when HW % 128 == 0; the
    # rare ragged case is zero-padded (padded pixels self-mask: target rows sum to 0).
    pred = predict_simplex.reshape(B, Cin, HW)
    tgt = onehot_target.reshape(B, Cout, HW)
    n_rows = pl.cdiv(HW, _LANE)
    hw_pad = n_rows * _LANE
    if hw_pad != HW:
        pad = hw_pad - HW
        pred = jnp.pad(pred, ((0, 0), (0, 0), (0, pad)))
        tgt = jnp.pad(tgt, ((0, 0), (0, 0), (0, pad)))
    pred = pred.reshape(B, Cin, n_rows, _LANE)
    tgt = tgt.reshape(B, Cout, n_rows, _LANE)

    # Row tile: multiple of 8 (sublane) unless it covers the whole (small) row axis.
    if n_rows <= r_tile:
        r_tile = n_rows
    else:
        r_tile = max(8, (r_tile // 8) * 8)
    n_tiles = pl.cdiv(n_rows, r_tile)
    tiles_per_core = pl.cdiv(n_tiles, n_cores)
    acc_rows = 8 if r_tile % 8 == 0 else r_tile

    def px_index(core, b, j):
        t = jnp.minimum(core * tiles_per_core + j, n_tiles - 1)   # clamp; masked in-kernel
        return (b, 0, t, 0)

    partials = pl.pallas_call(
        functools.partial(_kl_kernel, n_rows=n_rows, r_tile=r_tile, eps=_EPS),
        out_shape=jax.ShapeDtypeStruct((n_cores, 8, _LANE), jnp.float32),
        grid_spec=pltpu.PrefetchScalarGridSpec(
            num_scalar_prefetch=0,
            grid=(n_cores, B, tiles_per_core),
            in_specs=[
                pl.BlockSpec((None, Cin, r_tile, _LANE), px_index),
                pl.BlockSpec((None, Cout, r_tile, _LANE), px_index),
                pl.BlockSpec(memory_space=pltpu.MemorySpace.SMEM),   # (Cin, Cout) scalars
            ],
            out_specs=pl.BlockSpec((1, 8, _LANE), lambda core, b, j: (core, 0, 0)),
            scratch_shapes=[pltpu.VMEM((acc_rows, _LANE), jnp.float32)],
        ),
        compiler_params=pltpu.CompilerParams(
            dimension_semantics=("parallel", "arbitrary", "arbitrary")),
    )(pred, tgt, p_mat)

    # Kernel accumulates sum over valid pixels of t_sum * log(red_sel + eps)  (<= 0).
    kl_mean = -jnp.sum(partials[:, 0, 0]) / float(B * HW)

    # Entropy regularizer on the tiny (Cin, Cout) softmaxed matrix: plain JAX glue.
    ent = jnp.mean(-jnp.sum(p_mat * jnp.log(p_mat + _EPS), axis=1))

    # TODO(synk): accepting an integer label map (instead of f32 one-hot) would cut HBM
    # bytes/pixel further, but the module's forward signature takes a one-hot tensor.
    return kl_mean + ent * entropy_decay


def _reference_loss(predict_simplex, onehot_target, translate_matrix, entropy_decay=0.001):
    """Pure-JAX reference mirroring the PyTorch forward exactly."""
    p_mat = jax.nn.softmax(translate_matrix.astype(jnp.float32), axis=1)
    reduced = jnp.einsum('bchw,ck->bkhw', predict_simplex.astype(jnp.float32), p_mat)
    tgt = onehot_target.astype(jnp.float32)
    kl = -tgt * jnp.log((reduced + _EPS) / (tgt + _EPS))
    kl = jnp.mean(jnp.sum(kl, axis=1))
    ent = jnp.mean(-jnp.sum(p_mat * jnp.log(p_mat + _EPS), axis=1))
    return kl + ent * entropy_decay


if __name__ == "__main__":
    key = jax.random.PRNGKey(0)

    # Case 1: small, 128-aligned pixel count (input_num_classes=4, output_num_classes=3).
    B, Cin, Cout, H, W = 2, 4, 3, 16, 16
    k1, k2, k3 = jax.random.split(key, 3)
    predict_simplex = jax.nn.softmax(jax.random.normal(k1, (B, Cin, H, W), jnp.float32), axis=1)
    tgt_idx = jax.random.randint(k2, (B, H, W), 0, Cout)
    onehot_target = jax.nn.one_hot(tgt_idx, Cout, axis=1, dtype=jnp.float32)
    translate_matrix = jax.random.normal(k3, (Cin, Cout), jnp.float32)

    loss = jax.block_until_ready(
        adaptive_over_segmented_loss(predict_simplex, onehot_target, translate_matrix))
    ref = jax.block_until_ready(
        _reference_loss(predict_simplex, onehot_target, translate_matrix))
    assert jnp.allclose(loss, ref, rtol=1e-5, atol=1e-6), (loss, ref)

    # Case 2: non-128-multiple pixel count + ragged row tile + 2-way core split
    # (exercises the zero-pad, iota-mask and multi-core code paths).
    B2, H2, W2 = 2, 36, 36
    k4, k5, k6 = jax.random.split(jax.random.PRNGKey(1), 3)
    ps2 = jax.nn.softmax(jax.random.normal(k4, (B2, Cin, H2, W2), jnp.float32), axis=1)
    oh2 = jax.nn.one_hot(jax.random.randint(k5, (B2, H2, W2), 0, Cout), Cout, axis=1,
                         dtype=jnp.float32)
    tm2 = jax.random.normal(k6, (Cin, Cout), jnp.float32)
    loss2 = jax.block_until_ready(
        adaptive_over_segmented_loss(ps2, oh2, tm2, r_tile=8, n_cores=2))
    ref2 = jax.block_until_ready(_reference_loss(ps2, oh2, tm2))
    assert jnp.allclose(loss2, ref2, rtol=1e-5, atol=1e-6), (loss2, ref2)

    print("KERNEL_OK")
</pallas_src>

<mosaic_0001>
module attributes {stable_mosaic.version = 11 : i64} {
  func.func @_kl_kernel(%arg0: i32, %arg1: i32, %arg2: i32, %arg3: memref<1x4x2x128xf32, #tpu.memory_space<vmem>>, %arg4: memref<1x3x2x128xf32, #tpu.memory_space<vmem>>, %arg5: memref<4x3xf32, #tpu.memory_space<smem>>, %arg6: memref<1x8x128xf32, #tpu.memory_space<vmem>>, %arg7: memref<2x128xf32, #tpu.memory_space<vmem>>) attributes {dimension_semantics = [#tpu.dimension_semantics<parallel>, #tpu.dimension_semantics<arbitrary>, #tpu.dimension_semantics<arbitrary>], iteration_bounds = array<i64: 1, 2, 1>, scalar_prefetch = 0 : i64, scratch_operands = 1 : i64, tpu.core_type = #tpu.core_type<tc>, window_params = [{transform_indices = @transform_0, window_bounds = array<i64: 1, 4, 2, 128>}, {transform_indices = @transform_1, window_bounds = array<i64: 1, 3, 2, 128>}, {transform_indices = @transform_2, window_bounds = array<i64: 4, 3>}, {transform_indices = @transform_3, window_bounds = array<i64: 1, 8, 128>}]} {
    %c0_i32 = arith.constant 0 : i32
    %0 = arith.cmpi eq, %arg1, %c0_i32 : i32
    %c0_i32_0 = arith.constant 0 : i32
    %1 = arith.cmpi eq, %arg2, %c0_i32_0 : i32
    %2 = arith.andi %0, %1 : i1
    %3 = arith.extui %2 : i1 to i32
    %c0_i32_1 = arith.constant 0 : i32
    %4 = arith.cmpi ne, %3, %c0_i32_1 : i32
    scf.if %4 {
      %cst_40 = arith.constant 0.000000e+00 : f32
      %122 = vector.broadcast %cst_40 : f32 to vector<2x128xf32>
      %c0_41 = arith.constant 0 : index
      %c0_42 = arith.constant 0 : index
      %123 = vector.load %arg7[%c0_41, %c0_42] : memref<2x128xf32, #tpu.memory_space<vmem>>, vector<2x128xf32>
      tpu.vector_store %arg7[%c0_41, %c0_42], %122 {strides = array<i32>} : memref<2x128xf32, #tpu.memory_space<vmem>>, vector<2x128xf32>,
    } else {
    }
    %c0 = arith.constant 0 : index
    %c0_2 = arith.constant 0 : index
    %c0_3 = arith.constant 0 : index
    %c0_4 = arith.constant 0 : index
    %5 = vector.load %arg3[%c0, %c0_2, %c0_3, %c0_4] : memref<1x4x2x128xf32, #tpu.memory_space<vmem>>, vector<1x4x2x128xf32>
    %6 = vector.shape_cast %5 : vector<1x4x2x128xf32> to vector<4x2x128xf32>
    %c0_5 = arith.constant 0 : index
    %c0_6 = arith.constant 0 : index
    %c0_7 = arith.constant 0 : index
    %c0_8 = arith.constant 0 : index
    %7 = vector.load %arg4[%c0_5, %c0_6, %c0_7, %c0_8] : memref<1x3x2x128xf32, #tpu.memory_space<vmem>>, vector<1x3x2x128xf32>
    %8 = vector.shape_cast %7 : vector<1x3x2x128xf32> to vector<3x2x128xf32>
    %cst = arith.constant 0.000000e+00 : f32
    %9 = vector.broadcast %cst : f32 to vector<2x128xf32>
    %cst_9 = arith.constant 0.000000e+00 : f32
    %10 = vector.broadcast %cst_9 : f32 to vector<2x128xf32>
    %c0_10 = arith.constant 0 : index
    %c0_11 = arith.constant 0 : index
    %11 = memref.load %arg5[%c0_10, %c0_11] : memref<4x3xf32, #tpu.memory_space<smem>>
    %12 = vector.extract_strided_slice %6 {offsets = [0, 0, 0], sizes = [1, 2, 128], strides = [1, 1, 1]} : vector<4x2x128xf32> to vector<1x2x128xf32>
    %13 = vector.shape_cast %12 : vector<1x2x128xf32> to vector<2x128xf32>
    %14 = vector.broadcast %11 : f32 to vector<2x128xf32>
    %15 = arith.mulf %14, %13 : vector<2x128xf32>
    %c1 = arith.constant 1 : index
    %c0_12 = arith.constant 0 : index
    %16 = memref.load %arg5[%c1, %c0_12] : memref<4x3xf32, #tpu.memory_space<smem>>
    %17 = vector.extract_strided_slice %6 {offsets = [1, 0, 0], sizes = [1, 2, 128], strides = [1, 1, 1]} : vector<4x2x128xf32> to vector<1x2x128xf32>
    %18 = vector.shape_cast %17 : vector<1x2x128xf32> to vector<2x128xf32>
    %19 = vector.broadcast %16 : f32 to vector<2x128xf32>
    %20 = arith.mulf %19, %18 : vector<2x128xf32>
    %21 = arith.addf %15, %20 : vector<2x128xf32>
    %c2 = arith.constant 2 : index
    %c0_13 = arith.constant 0 : index
    %22 = memref.load %arg5[%c2, %c0_13] : memref<4x3xf32, #tpu.memory_space<smem>>
    %23 = vector.extract_strided_slice %6 {offsets = [2, 0, 0], sizes = [1, 2, 128], strides = [1, 1, 1]} : vector<4x2x128xf32> to vector<1x2x128xf32>
    %24 = vector.shape_cast %23 : vector<1x2x128xf32> to vector<2x128xf32>
    %25 = vector.broadcast %22 : f32 to vector<2x128xf32>
    %26 = arith.mulf %25, %24 : vector<2x128xf32>
    %27 = arith.addf %21, %26 : vector<2x128xf32>
    %c3 = arith.constant 3 : index
    %c0_14 = arith.constant 0 : index
    %28 = memref.load %arg5[%c3, %c0_14] : memref<4x3xf32, #tpu.memory_space<smem>>
    %29 = vector.extract_strided_slice %6 {offsets = [3, 0, 0], sizes = [1, 2, 128], strides = [1, 1, 1]} : vector<4x2x128xf32> to vector<1x2x128xf32>
    %30 = vector.shape_cast %29 : vector<1x2x128xf32> to vector<2x128xf32>
    %31 = vector.broadcast %28 : f32 to vector<2x128xf32>
    %32 = arith.mulf %31, %30 : vector<2x128xf32>
    %33 = arith.addf %27, %32 : vector<2x128xf32>
    %34 = vector.extract_strided_slice %8 {offsets = [0, 0, 0], sizes = [1, 2, 128], strides = [1, 1, 1]} : vector<3x2x128xf32> to vector<1x2x128xf32>
    %35 = vector.shape_cast %34 : vector<1x2x128xf32> to vector<2x128xf32>
    %36 = arith.mulf %35, %33 : vector<2x128xf32>
    %37 = arith.addf %9, %36 : vector<2x128xf32>
    %38 = vector.extract_strided_slice %8 {offsets = [0, 0, 0], sizes = [1, 2, 128], strides = [1, 1, 1]} : vector<3x2x128xf32> to vector<1x2x128xf32>
    %39 = vector.shape_cast %38 : vector<1x2x128xf32> to vector<2x128xf32>
    %40 = arith.addf %10, %39 : vector<2x128xf32>
    %c0_15 = arith.constant 0 : index
    %c1_16 = arith.constant 1 : index
    %41 = memref.load %arg5[%c0_15, %c1_16] : memref<4x3xf32, #tpu.memory_space<smem>>
    %42 = vector.extract_strided_slice %6 {offsets = [0, 0, 0], sizes = [1, 2, 128], strides = [1, 1, 1]} : vector<4x2x128xf32> to vector<1x2x128xf32>
    %43 = vector.shape_cast %42 : vector<1x2x128xf32> to vector<2x128xf32>
    %44 = vector.broadcast %41 : f32 to vector<2x128xf32>
    %45 = arith.mulf %44, %43 : vector<2x128xf32>
    %c1_17 = arith.constant 1 : index
    %c1_18 = arith.constant 1 : index
    %46 = memref.load %arg5[%c1_17, %c1_18] : memref<4x3xf32, #tpu.memory_space<smem>>
    %47 = vector.extract_strided_slice %6 {offsets = [1, 0, 0], sizes = [1, 2, 128], strides = [1, 1, 1]} : vector<4x2x128xf32> to vector<1x2x128xf32>
    %48 = vector.shape_cast %47 : vector<1x2x128xf32> to vector<2x128xf32>
    %49 = vector.broadcast %46 : f32 to vector<2x128xf32>
    %50 = arith.mulf %49, %48 : vector<2x128xf32>
    %51 = arith.addf %45, %50 : vector<2x128xf32>
    %c2_19 = arith.constant 2 : index
    %c1_20 = arith.constant 1 : index
    %52 = memref.load %arg5[%c2_19, %c1_20] : memref<4x3xf32, #tpu.memory_space<smem>>
    %53 = vector.extract_strided_slice %6 {offsets = [2, 0, 0], sizes = [1, 2, 128], strides = [1, 1, 1]} : vector<4x2x128xf32> to vector<1x2x128xf32>
    %54 = vector.shape_cast %53 : vector<1x2x128xf32> to vector<2x128xf32>
    %55 = vector.broadcast %52 : f32 to vector<2x128xf32>
    %56 = arith.mulf %55, %54 : vector<2x128xf32>
    %57 = arith.addf %51, %56 : vector<2x128xf32>
    %c3_21 = arith.constant 3 : index
    %c1_22 = arith.constant 1 : index
    %58 = memref.load %arg5[%c3_21, %c1_22] : memref<4x3xf32, #tpu.memory_space<smem>>
    %59 = vector.extract_strided_slice %6 {offsets = [3, 0, 0], sizes = [1, 2, 128], strides = [1, 1, 1]} : vector<4x2x128xf32> to vector<1x2x128xf32>
    %60 = vector.shape_cast %59 : vector<1x2x128xf32> to vector<2x128xf32>
    %61 = vector.broadcast %58 : f32 to vector<2x128xf32>
    %62 = arith.mulf %61, %60 : vector<2x128xf32>
    %63 = arith.addf %57, %62 : vector<2x128xf32>
    %64 = vector.extract_strided_slice %8 {offsets = [1, 0, 0], sizes = [1, 2, 128], strides = [1, 1, 1]} : vector<3x2x128xf32> to vector<1x2x128xf32>
    %65 = vector.shape_cast %64 : vector<1x2x128xf32> to vector<2x128xf32>
    %66 = arith.mulf %65, %63 : vector<2x128xf32>
    %67 = arith.addf %37, %66 : vector<2x128xf32>
    %68 = vector.extract_strided_slice %8 {offsets = [1, 0, 0], sizes = [1, 2, 128], strides = [1, 1, 1]} : vector<3x2x128xf32> to vector<1x2x128xf32>
    %69 = vector.shape_cast %68 : vector<1x2x128xf32> to vector<2x128xf32>
    %70 = arith.addf %40, %69 : vector<2x128xf32>
    %c0_23 = arith.constant 0 : index
    %c2_24 = arith.constant 2 : index
    %71 = memref.load %arg5[%c0_23, %c2_24] : memref<4x3xf32, #tpu.memory_space<smem>>
    %72 = vector.extract_strided_slice %6 {offsets = [0, 0, 0], sizes = [1, 2, 128], strides = [1, 1, 1]} : vector<4x2x128xf32> to vector<1x2x128xf32>
    %73 = vector.shape_cast %72 : vector<1x2x128xf32> to vector<2x128xf32>
    %74 = vector.broadcast %71 : f32 to vector<2x128xf32>
    %75 = arith.mulf %74, %73 : vector<2x128xf32>
    %c1_25 = arith.constant 1 : index
    %c2_26 = arith.constant 2 : index
    %76 = memref.load %arg5[%c1_25, %c2_26] : memref<4x3xf32, #tpu.memory_space<smem>>
    %77 = vector.extract_strided_slice %6 {offsets = [1, 0, 0], sizes = [1, 2, 128], strides = [1, 1, 1]} : vector<4x2x128xf32> to vector<1x2x128xf32>
    %78 = vector.shape_cast %77 : vector<1x2x128xf32> to vector<2x128xf32>
    %79 = vector.broadcast %76 : f32 to vector<2x128xf32>
    %80 = arith.mulf %79, %78 : vector<2x128xf32>
    %81 = arith.addf %75, %80 : vector<2x128xf32>
    %c2_27 = arith.constant 2 : index
    %c2_28 = arith.constant 2 : index
    %82 = memref.load %arg5[%c2_27, %c2_28] : memref<4x3xf32, #tpu.memory_space<smem>>
    %83 = vector.extract_strided_slice %6 {offsets = [2, 0, 0], sizes = [1, 2, 128], strides = [1, 1, 1]} : vector<4x2x128xf32> to vector<1x2x128xf32>
    %84 = vector.shape_cast %83 : vector<1x2x128xf32> to vector<2x128xf32>
    %85 = vector.broadcast %82 : f32 to vector<2x128xf32>
    %86 = arith.mulf %85, %84 : vector<2x128xf32>
    %87 = arith.addf %81, %86 : vector<2x128xf32>
    %c3_29 = arith.constant 3 : index
    %c2_30 = arith.constant 2 : index
    %88 = memref.load %arg5[%c3_29, %c2_30] : memref<4x3xf32, #tpu.memory_space<smem>>
    %89 = vector.extract_strided_slice %6 {offsets = [3, 0, 0], sizes = [1, 2, 128], strides = [1, 1, 1]} : vector<4x2x128xf32> to vector<1x2x128xf32>
    %90 = vector.shape_cast %89 : vector<1x2x128xf32> to vector<2x128xf32>
    %91 = vector.broadcast %88 : f32 to vector<2x128xf32>
    %92 = arith.mulf %91, %90 : vector<2x128xf32>
    %93 = arith.addf %87, %92 : vector<2x128xf32>
    %94 = vector.extract_strided_slice %8 {offsets = [2, 0, 0], sizes = [1, 2, 128], strides = [1, 1, 1]} : vector<3x2x128xf32> to vector<1x2x128xf32>
    %95 = vector.shape_cast %94 : vector<1x2x128xf32> to vector<2x128xf32>
    %96 = arith.mulf %95, %93 : vector<2x128xf32>
    %97 = arith.addf %67, %96 : vector<2x128xf32>
    %98 = vector.extract_strided_slice %8 {offsets = [2, 0, 0], sizes = [1, 2, 128], strides = [1, 1, 1]} : vector<3x2x128xf32> to vector<1x2x128xf32>
    %99 = vector.shape_cast %98 : vector<1x2x128xf32> to vector<2x128xf32>
    %100 = arith.addf %70, %99 : vector<2x128xf32>
    %cst_31 = arith.constant 0.000000e+00 : f32
    %101 = vector.broadcast %cst_31 : f32 to vector<2x128xf32>
    %102 = arith.maximumf %97, %101 : vector<2x128xf32>
    %cst_32 = arith.constant 1.000000e-16 : f32
    %103 = vector.broadcast %cst_32 : f32 to vector<2x128xf32>
    %104 = arith.addf %102, %103 : vector<2x128xf32>
    %105 = math.log %104 : vector<2x128xf32>
    %106 = arith.mulf %100, %105 : vector<2x128xf32>
    %c1_i32 = arith.constant 1 : i32
    %107 = arith.muli %arg0, %c1_i32 : i32
    %108 = arith.addi %107, %arg2 : i32
    %c1_i32_33 = arith.constant 1 : i32
    %109 = arith.addi %108, %c1_i32_33 : i32
    %c2_i32 = arith.constant 2 : i32
    %110 = arith.muli %109, %c2_i32 : i32
    %c2_i32_34 = arith.constant 2 : i32
    %111 = arith.cmpi sgt, %110, %c2_i32_34 : i32
    %true = arith.constant true
    %112 = arith.xori %111, %true : i1
    %113 = arith.extui %112 : i1 to i32
    %c0_i32_35 = arith.constant 0 : i32
    %114 = arith.cmpi ne, %113, %c0_i32_35 : i32
    scf.if %114 {
      %c0_40 = arith.constant 0 : index
      %c0_41 = arith.constant 0 : index
      %122 = vector.load %arg7[%c0_40, %c0_41] : memref<2x128xf32, #tpu.memory_space<vmem>>, vector<2x128xf32>
      %123 = arith.addf %122, %106 : vector<2x128xf32>
      %c0_42 = arith.constant 0 : index
      %c0_43 = arith.constant 0 : index
      %124 = vector.load %arg7[%c0_42, %c0_43] : memref<2x128xf32, #tpu.memory_space<vmem>>, vector<2x128xf32>
      tpu.vector_store %arg7[%c0_42, %c0_43], %123 {strides = array<i32>} : memref<2x128xf32, #tpu.memory_space<vmem>>, vector<2x128xf32>,
    } else {
    }
    %115 = arith.extui %111 : i1 to i32
    %c0_i32_36 = arith.constant 0 : i32
    %116 = arith.cmpi ne, %115, %c0_i32_36 : i32
    scf.if %116 {
      %122 = tpu.iota {dimensions = array<i32: 0>} : vector<2x128xi32>
      %c2_i32_40 = arith.constant 2 : i32
      %123 = arith.muli %108, %c2_i32_40 : i32
      %124 = vector.broadcast %123 : i32 to vector<2x128xi32>
      %125 = arith.addi %124, %122 : vector<2x128xi32>
      %c2_i32_41 = arith.constant 2 : i32
      %126 = vector.broadcast %c2_i32_41 : i32 to vector<2x128xi32>
      %127 = arith.cmpi slt, %125, %126 : vector<2x128xi32>
      %cst_42 = arith.constant 0.000000e+00 : f32
      %128 = vector.broadcast %cst_42 : f32 to vector<2x128xf32>
      %129 = arith.select %127, %106, %128 : vector<2x128xi1>, vector<2x128xf32>
      %c0_43 = arith.constant 0 : index
      %c0_44 = arith.constant 0 : index
      %130 = vector.load %arg7[%c0_43, %c0_44] : memref<2x128xf32, #tpu.memory_space<vmem>>, vector<2x128xf32>
      %131 = arith.addf %130, %129 : vector<2x128xf32>
      %c0_45 = arith.constant 0 : index
      %c0_46 = arith.constant 0 : index
      %132 = vector.load %arg7[%c0_45, %c0_46] : memref<2x128xf32, #tpu.memory_space<vmem>>, vector<2x128xf32>
      tpu.vector_store %arg7[%c0_45, %c0_46], %131 {strides = array<i32>} : memref<2x128xf32, #tpu.memory_space<vmem>>, vector<2x128xf32>,
    } else {
    }
    %c1_i32_37 = arith.constant 1 : i32
    %117 = arith.cmpi eq, %arg1, %c1_i32_37 : i32
    %c0_i32_38 = arith.constant 0 : i32
    %118 = arith.cmpi eq, %arg2, %c0_i32_38 : i32
    %119 = arith.andi %117, %118 : i1
    %120 = arith.extui %119 : i1 to i32
    %c0_i32_39 = arith.constant 0 : i32
    %121 = arith.cmpi ne, %120, %c0_i32_39 : i32
    scf.if %121 {
      %c0_40 = arith.constant 0 : index
      %c0_41 = arith.constant 0 : index
      %122 = vector.load %arg7[%c0_40, %c0_41] : memref<2x128xf32, #tpu.memory_space<vmem>>, vector<2x128xf32>
      %123 = vector.shape_cast %122 : vector<2x128xf32> to vector<1x2x128xf32>
      %cst_42 = arith.constant dense<0.000000e+00> : vector<1xf32>
      %124 = vector.multi_reduction <add>, %123, %cst_42 [1, 2] : vector<1x2x128xf32> to vector<1xf32>
      %125 = vector.shape_cast %124 : vector<1xf32> to vector<1x1x1xf32>
      %126 = vector.extract %125[0, 0, 0] : f32 from vector<1x1x1xf32>
      %cst_43 = arith.constant 1.000000e+00 : f32
      %127 = vector.broadcast %cst_43 : f32 to vector<1x8x128xf32>
      %128 = vector.broadcast %126 : f32 to vector<1x8x128xf32>
      %129 = arith.mulf %128, %127 : vector<1x8x128xf32>
      %c0_44 = arith.constant 0 : index
      %c0_45 = arith.constant 0 : index
      %c0_46 = arith.constant 0 : index
      %130 = vector.load %arg6[%c0_44, %c0_45, %c0_46] : memref<1x8x128xf32, #tpu.memory_space<vmem>>, vector<1x8x128xf32>
      tpu.vector_store %arg6[%c0_44, %c0_45, %c0_46], %129 {strides = array<i32>} : memref<1x8x128xf32, #tpu.memory_space<vmem>>, vector<1x8x128xf32>,
    } else {
    }
    return
  }
  func.func @transform_0(%arg0: i32, %arg1: i32, %arg2: i32) -> (i32, i32, i32, i32) {
    %c1_i32 = arith.constant 1 : i32
    %0 = arith.muli %arg0, %c1_i32 : i32
    %1 = arith.addi %0, %arg2 : i32
    %c0_i32 = arith.constant 0 : i32
    %2 = arith.minsi %1, %c0_i32 : i32
    %c0_i32_0 = arith.constant 0 : i32
    %c0_i32_1 = arith.constant 0 : i32
    %c0_i32_2 = arith.constant 0 : i32
    return %arg1, %c0_i32_0, %2, %c0_i32_1 : i32, i32, i32, i32
  }
  func.func @transform_1(%arg0: i32, %arg1: i32, %arg2: i32) -> (i32, i32, i32, i32) {
    %c1_i32 = arith.constant 1 : i32
    %0 = arith.muli %arg0, %c1_i32 : i32
    %1 = arith.addi %0, %arg2 : i32
    %c0_i32 = arith.constant 0 : i32
    %2 = arith.minsi %1, %c0_i32 : i32
    %c0_i32_0 = arith.constant 0 : i32
    %c0_i32_1 = arith.constant 0 : i32
    %c0_i32_2 = arith.constant 0 : i32
    return %arg1, %c0_i32_0, %2, %c0_i32_1 : i32, i32, i32, i32
  }
  func.func @transform_2(%arg0: i32, %arg1: i32, %arg2: i32) -> (i32, i32) {
    %c0_i32 = arith.constant 0 : i32
    %c0_i32_0 = arith.constant 0 : i32
    %c0_i32_1 = arith.constant 0 : i32
    return %c0_i32, %c0_i32_0 : i32, i32
  }
  func.func @transform_3(%arg0: i32, %arg1: i32, %arg2: i32) -> (i32, i32, i32) {
    %c0_i32 = arith.constant 0 : i32
    %c0_i32_0 = arith.constant 0 : i32
    %c0_i32_1 = arith.constant 0 : i32
    return %arg0, %c0_i32, %c0_i32_0 : i32, i32, i32
  }
}

</mosaic_0001>

<llo_original>
// kernel: tpu_custom_call.1
$region0: #{tpu_custom_call.1}
  #allocation0 [shape = 'u32[]', space=smem, size = 0x4, offset = 0x4, fixed_abs, tag = 'smem constant byte address 0x4 - core index']
  #allocation1 [shape = 'u32[72,128]{1,0:T(1,128)}', space=vmem, size = 0x9000, scoped, tag = 'internal scratch']
  #allocation2 [shape = 'f32[2,128]{1,0:T(2,128)}', space=vmem, size = 0x400, scoped, tag = 'scratch operand']
  %s0 = inlined_call_operand.hbm [shape: f32[2,4,2,128], index: 0, kind: input, shape index: {}]
  %s1 = inlined_call_operand.hbm [shape: f32[2,3,2,128], index: 1, kind: input, shape index: {}]
  %s2 = inlined_call_operand.hbm [shape: f32[4,3], index: 2, kind: input, shape index: {}]
  %s3 = inlined_call_operand.hbm [shape: f32[1,8,128], index: 3, kind: output, shape index: {}]
  %s4 = sld [smem:[#allocation0]]
  $region73: #{tpu_custom_call.1} parent=0
    _
  %s6 = ssub.s32 1, %s4
  %s7 = scalar_select 0, %s6, %s4
  $region1: #{tpu_custom_call.1} parent=0
    #allocation3 [shape = 'u8[8192]{0}', space=vmem, size = 0x2000, scoped, tag = 'input window, operand 0']
    #allocation4 [shape = 's32[2]{0}', space=sflag, size = 0x8, scoped, tag = 'scoped memory for tpu_custom_call.1']
    #allocation5 [shape = 's32[2]{0}', space=sflag, size = 0x8, scoped, tag = 'scoped memory for tpu_custom_call.1']
    #allocation6 [shape = 's32[2]{0}', space=sflag, size = 0x8, scoped, tag = 'scoped memory for tpu_custom_call.1']
    #allocation7 [shape = 'u8[6144]{0}', space=vmem, size = 0x1800, scoped, tag = 'input window, operand 1']
    #allocation8 [shape = 's32[2]{0}', space=sflag, size = 0x8, scoped, tag = 'scoped memory for tpu_custom_call.1']
    #allocation9 [shape = 'u8[2048]{0}', space=smem, size = 0x800, scoped, tag = 'input window, operand 2, single buffered']
    #allocation10 [shape = 'u8[4096]{0}', space=vmem, size = 0x1000, scoped, tag = 'output window, operand 0, single buffered']
    %8 = vsyncpa [#allocation4], 0
    %s9 = scalar_lea.sflag [#allocation4], 1
    %10 = vsyncpa %s9, 0
    %11 = vsyncpa [#allocation8], 0
    %s12 = scalar_lea.sflag [#allocation8], 1
    %13 = vsyncpa %s12, 0
    %14 = vsyncpa [#allocation6], 0
    %15 = vsyncpa [#allocation5], 0
    loop: start=0, step=1, limit=4
    $region2: #{tpu_custom_call.1} parent=1 // loop_pre_header
      _
    $region3: #{tpu_custom_call.1} parent=1 // loop_header
      %s17 = sphi 0, %s21
      %p18 = scmp.ge.s32.totalorder %s17, 4
      %s24 = sphi 0, %s43
      %s25 = sphi 0, %s39
      %s26 = sphi 0, %s35
      %s27 = sphi 0, %s24
      %s28 = sphi 0, %s25
      %s29 = sphi 0, %s26
      %s30 = sphi 0, %s27
      %s31 = sphi 0, %s28
      %s32 = sphi 0, %s29
      %s54 = sphi 0, %s56
      %s57 = sphi 0, %s54
      %s58 = sphi 0, %s57
      %s74 = sphi 0, %s58
      %s88 = sphi 0, %s90
      %s91 = sphi 0, %s88
      %s92 = sphi 0, %s91
      %s108 = sphi 0, %s92
      %s112 = sphi 0, %s112
      %s114 = sphi 0, %s112
      %s115 = sphi 0, %s114
      %s129 = sphi 0, %s115
      %s135 = sphi 0, %s137
      %s138 = sphi 0, %s135
      %s139 = sphi 0, %s138
      %s155 = sphi 0, %s139
    $region4: #{tpu_custom_call.1} parent=1 // loop_header_branch
      %20 = sbr.rel (%p18) target = $region8
    $region5: #{tpu_custom_call.1} parent=1 // loop_body
      %s22 = ssub.s32 %s17, 1
      %s23 = ssub.s32 %s17, 2
      %s33 = sadd.s32 1, %s26
      %p34 = scmp.ge.s32.totalorder %s33, 1
      %s35 = scalar_select %p34, 0, %s33
      %s36 = sadd.s32 1, %s25
      %s37 = scalar_select %p34, %s36, %s25
      %p38 = scmp.ge.s32.totalorder %s37, 2
      %s39 = scalar_select %p38, 0, %s37
      %s40 = sadd.s32 1, %s24
      %s41 = scalar_select %p38, %s40, %s24
      %p42 = scmp.ge.s32.totalorder %s41, 1
      %s43 = scalar_select %p42, 0, %s41
      %s44 = sadd.s32 %s24, %s26
      %p45 = scmp.lt.s32.totalorder %s44, 0
      %s46 = scalar_select %p45, %s44, 0
      %s47 = sadd.s32 %s43, %s35
      %p48 = scmp.lt.s32.totalorder %s47, 0
      %s49 = scalar_select %p48, %s47, 0
      %s50 = ssub.s32 %s25, %s39
      %s51 = ssub.s32 %s46, %s49
      %s52 = sor.u32 %s50, %s51
      %p53 = scmp.eq.s32.totalorder %s52, 0
      %s55 = sadd.s32 %s54, 1
      %s56 = scalar_select %p53, %s54, %s55
      %p59 = pneg %p53
      %p60 = scmp.eq.s32.totalorder %s17, 1
      %p61 = por %p59, %p60
      %p62 = scmp.ne.s32.totalorder %s54, %s57
      %p63 = scmp.eq.s32.totalorder %s17, 0
      %p64 = por %p62, %p63
      %p65 = scmp.ne.s32.totalorder %s54, %s57
      %p66 = scmp.eq.s32.totalorder %s22, 1
      %p67 = por %p65, %p66
      %p68 = scmp.ne.s32.totalorder %s57, %s58
      %p69 = scmp.eq.s32.totalorder %s22, 0
      %p70 = por %p68, %p69
      %p71 = scmp.ne.s32.totalorder %s57, %s58
      %p72 = scmp.eq.s32.totalorder %s23, 1
      %p73 = por %p71, %p72
      %p75 = scmp.ne.s32.totalorder %s58, %s74
      %p76 = scmp.eq.s32.totalorder %s23, 0
      %p77 = por %p75, %p76
      %s78 = sadd.s32 %s24, %s26
      %p79 = scmp.lt.s32.totalorder %s78, 0
      %s80 = scalar_select %p79, %s78, 0
      %s81 = sadd.s32 %s43, %s35
      %p82 = scmp.lt.s32.totalorder %s81, 0
      %s83 = scalar_select %p82, %s81, 0
      %s84 = ssub.s32 %s25, %s39
      %s85 = ssub.s32 %s80, %s83
      %s86 = sor.u32 %s84, %s85
      %p87 = scmp.eq.s32.totalorder %s86, 0
      %s89 = sadd.s32 %s88, 1
      %s90 = scalar_select %p87, %s88, %s89
      %p93 = pneg %p87
      %p94 = scmp.eq.s32.totalorder %s17, 1
      %p95 = por %p93, %p94
      %p96 = scmp.ne.s32.totalorder %s88, %s91
      %p97 = scmp.eq.s32.totalorder %s17, 0
      %p98 = por %p96, %p97
      %p99 = scmp.ne.s32.totalorder %s88, %s91
      %p100 = scmp.eq.s32.totalorder %s22, 1
      %p101 = por %p99, %p100
      %p102 = scmp.ne.s32.totalorder %s91, %s92
      %p103 = scmp.eq.s32.totalorder %s22, 0
      %p104 = por %p102, %p103
      %p105 = scmp.ne.s32.totalorder %s91, %s92
      %p106 = scmp.eq.s32.totalorder %s23, 1
      %p107 = por %p105, %p106
      %p109 = scmp.ne.s32.totalorder %s92, %s108
      %p110 = scmp.eq.s32.totalorder %s23, 0
      %p111 = por %p109, %p110
      %s113 = sadd.s32 %s112, 1
      %p116 = scmp.eq.s32.totalorder %s17, 1
      %p117 = scmp.ne.s32.totalorder %s112, %s114
      %p118 = scmp.eq.s32.totalorder %s17, 0
      %p119 = por %p117, %p118
      %p120 = scmp.ne.s32.totalorder %s112, %s114
      %p121 = scmp.eq.s32.totalorder %s22, 1
      %p122 = por %p120, %p121
      %p123 = scmp.ne.s32.totalorder %s114, %s115
      %p124 = scmp.eq.s32.totalorder %s22, 0
      %p125 = por %p123, %p124
      %p126 = scmp.ne.s32.totalorder %s114, %s115
      %p127 = scmp.eq.s32.totalorder %s23, 1
      %p128 = por %p126, %p127
      %p130 = scmp.ne.s32.totalorder %s115, %s129
      %p131 = scmp.eq.s32.totalorder %s23, 0
      %p132 = por %p130, %p131
      %s133 = ssub.s32 %s24, %s43
      %p134 = scmp.eq.s32.totalorder %s133, 0
      %s136 = sadd.s32 %s135, 1
      %s137 = scalar_select %p134, %s135, %s136
      %p140 = pneg %p134
      %p141 = scmp.eq.s32.totalorder %s17, 1
      %p142 = por %p140, %p141
      %p143 = scmp.ne.s32.totalorder %s135, %s138
      %p144 = scmp.eq.s32.totalorder %s17, 0
      %p145 = por %p143, %p144
      %p146 = scmp.ne.s32.totalorder %s135, %s138
      %p147 = scmp.eq.s32.totalorder %s22, 1
      %p148 = por %p146, %p147
      %p149 = scmp.ne.s32.totalorder %s138, %s139
      %p150 = scmp.eq.s32.totalorder %s22, 0
      %p151 = por %p149, %p150
      %p152 = scmp.ne.s32.totalorder %s138, %s139
      %p153 = scmp.eq.s32.totalorder %s23, 1
      %p154 = por %p152, %p153
      %p156 = scmp.ne.s32.totalorder %s139, %s155
      %p157 = scmp.eq.s32.totalorder %s23, 0
      %p158 = por %p156, %p157
      %p159 = scmp.le.s32.totalorder 1, %s17
      %p160 = scmp.lt.s32.totalorder %s17, 3
      %p161 = pnand %p159, %p160
      %p162 = pneg %p161
      // Predicated region
      $region9: #{tpu_custom_call.1} parent=5 // pred_check
        _
      $region10: #{tpu_custom_call.1} parent=5 // pred_check_branch
        %164 = sbr.rel (%p161) target = $region12
      $region11: #{tpu_custom_call.1} parent=5 // pred_region
        %s165 = ssub.s32 %s17, 1
        // Predicated region
        $region13: #{tpu_custom_call.1} parent=11 // pred_check
          %p166 = pneg %p125
        $region14: #{tpu_custom_call.1} parent=11 // pred_check_branch
          %168 = sbr.rel (%p166) target = $region16
        $region15: #{tpu_custom_call.1} parent=11 // pred_region
          %170 = vsyncadd [#allocation6], 0
          %s172 = sshll.u32 %s2, 4
          %s173 = int_to_ptr.hbm [resolvable:$true] %s172
          %175 = dma.hbm_to_smem %s173, 64, [#allocation9], [#allocation6]
        $region16: #{tpu_custom_call.1} parent=11 // pred_fallthru
          _
      $region12: #{tpu_custom_call.1} parent=5 // pred_fallthru
        _
      %p176 = scmp.lt.s32.totalorder %s17, 2
      // Predicated region
      $region17: #{tpu_custom_call.1} parent=5 // pred_check
        %p177 = pneg %p176
      $region18: #{tpu_custom_call.1} parent=5 // pred_check_branch
        %179 = sbr.rel (%p177) target = $region20
      $region19: #{tpu_custom_call.1} parent=5 // pred_region
        // Predicated region
        $region21: #{tpu_custom_call.1} parent=19 // pred_check
          %p180 = pneg %p64
        $region22: #{tpu_custom_call.1} parent=19 // pred_check_branch
          %182 = sbr.rel (%p180) target = $region24
        $region23: #{tpu_custom_call.1} parent=19 // pred_region
          %s183 = sand.u32 %s54, 1
          %s184 = scalar_lea.sflag [#allocation4], %s183
          %s185 = sand.u32 %s54, 1
          %s186 = smul.addr %s185, 8
          %s187 = scalar_lea.vmem [#allocation3], %s186
          %s188 = sadd.s32 %s24, %s26
          %p189 = scmp.lt.s32.totalorder %s188, 0
          %s190 = scalar_select %p189, %s188, 0
          %192 = vsyncadd %s184, 0
          %s193 = smul.addr %s25, 4
          %s194 = sadd.s32 %s190, %s193
          %s195 = smul.addr %s194, 2
          %s196 = scalar_lea.hbm %s0, %s195
          %s197 = sshll.u32 %s196, 4
          %s198 = int_to_ptr.hbm [resolvable:$true] %s197
          %s199 = sshll.u32 %s187, 4
          %s200 = int_to_ptr.vmem [resolvable:$true] %s199
          %205 = dma.hbm_to_vmem [thread:$0]  %s198, 128, %s200, %s184, 32, 32, 2
        $region24: #{tpu_custom_call.1} parent=19 // pred_fallthru
          _
        // Predicated region
        $region25: #{tpu_custom_call.1} parent=19 // pred_check
          %p206 = pneg %p98
        $region26: #{tpu_custom_call.1} parent=19 // pred_check_branch
          %208 = sbr.rel (%p206) target = $region28
        $region27: #{tpu_custom_call.1} parent=19 // pred_region
          %s209 = sand.u32 %s88, 1
          %s210 = scalar_lea.sflag [#allocation8], %s209
          %s211 = sand.u32 %s88, 1
          %s212 = smul.addr %s211, 6
          %s213 = scalar_lea.vmem [#allocation7], %s212
          %s214 = sadd.s32 %s24, %s26
          %p215 = scmp.lt.s32.totalorder %s214, 0
          %s216 = scalar_select %p215, %s214, 0
          %218 = vsyncadd %s210, 0
          %s219 = smul.addr %s25, 3
          %s220 = sadd.s32 %s216, %s219
          %s221 = smul.addr %s220, 2
          %s222 = scalar_lea.hbm %s1, %s221
          %s223 = sshll.u32 %s222, 4
          %s224 = int_to_ptr.hbm [resolvable:$true] %s223
          %s225 = sshll.u32 %s213, 4
          %s226 = int_to_ptr.vmem [resolvable:$true] %s225
          %231 = dma.hbm_to_vmem [thread:$0]  %s224, 96, %s226, %s210, 32, 32, 2
        $region28: #{tpu_custom_call.1} parent=19 // pred_fallthru
          _
      $region20: #{tpu_custom_call.1} parent=5 // pred_fallthru
        _
      %p232 = scmp.le.s32.totalorder 1, %s17
      %p233 = scmp.lt.s32.totalorder %s17, 3
      %p234 = pnand %p232, %p233
      %p235 = pneg %p234
      // Predicated region
      $region29: #{tpu_custom_call.1} parent=5 // pred_check
        _
      $region30: #{tpu_custom_call.1} parent=5 // pred_check_branch
        %237 = sbr.rel (%p234) target = $region32
      $region31: #{tpu_custom_call.1} parent=5 // pred_region
        %s238 = ssub.s32 %s17, 1
        %s239 = sand.u32 %s57, 1
        %s240 = scalar_lea.sflag [#allocation4], %s239
        %s241 = sand.u32 %s57, 1
        %s242 = smul.addr %s241, 8
        %s243 = scalar_lea.vmem [#allocation3], %s242
        // Predicated region
        $region33: #{tpu_custom_call.1} parent=31 // pred_check
          %p244 = pneg %p70
        $region34: #{tpu_custom_call.1} parent=31 // pred_check_branch
          %246 = sbr.rel (%p244) target = $region36
        $region35: #{tpu_custom_call.1} parent=31 // pred_region
          %248 = dma.done %s240, 128
        $region36: #{tpu_custom_call.1} parent=31 // pred_fallthru
          _
        %s249 = sand.u32 %s91, 1
        %s250 = scalar_lea.sflag [#allocation8], %s249
        %s251 = sand.u32 %s91, 1
        %s252 = smul.addr %s251, 6
        %s253 = scalar_lea.vmem [#allocation7], %s252
        // Predicated region
        $region37: #{tpu_custom_call.1} parent=31 // pred_check
          %p254 = pneg %p104
        $region38: #{tpu_custom_call.1} parent=31 // pred_check_branch
          %256 = sbr.rel (%p254) target = $region40
        $region39: #{tpu_custom_call.1} parent=31 // pred_region
          %258 = dma.done %s250, 96
        $region40: #{tpu_custom_call.1} parent=31 // pred_fallthru
          _
        // Predicated region
        $region41: #{tpu_custom_call.1} parent=31 // pred_check
          %p259 = pneg %p125
        $region42: #{tpu_custom_call.1} parent=31 // pred_check_branch
          %261 = sbr.rel (%p259) target = $region44
        $region43: #{tpu_custom_call.1} parent=31 // pred_region
          %263 = dma.done [#allocation6], 64
        $region44: #{tpu_custom_call.1} parent=31 // pred_fallthru
          _
        %264 = sfence
        %s265 = sand.u32 %s57, 1
        %s266 = scalar_lea.sflag [#allocation4], %s265
        %s267 = sand.u32 %s57, 1
        %s268 = smul.addr %s267, 8
        %s269 = scalar_lea.vmem [#allocation3], %s268
        %p270 = pneg %p70
        %p271 = pneg %p67
        %s272 = sand.u32 %s91, 1
        %s273 = scalar_lea.sflag [#allocation8], %s272
        %s274 = sand.u32 %s91, 1
        %s275 = smul.addr %s274, 6
        %s276 = scalar_lea.vmem [#allocation7], %s275
        %p277 = pneg %p104
        %p278 = pneg %p101
        %p279 = pneg %p125
        %p280 = pneg %p122
        %p281 = pneg %p151
        %p282 = pneg %p148
        %s283 = sadd.s32 %s27, %s29
        %p284 = scmp.lt.s32.totalorder %s283, 0
        %s285 = scalar_select %p284, %s283, 0
        %s286 = sadd.s32 %s27, %s29
        %p287 = scmp.lt.s32.totalorder %s286, 0
        %s288 = scalar_select %p287, %s286, 0
        %p289 = scmp.eq.s32.totalorder %s28, 0
        %p290 = scmp.eq.s32.totalorder %s29, 0
        %p291 = pnand %p289, %p290
        %p292 = pneg %p291
        // Predicated region
        $region45: #{tpu_custom_call.1} parent=31 // pred_check
          _
        $region46: #{tpu_custom_call.1} parent=31 // pred_check_branch
          %294 = sbr.rel (%p291) target = $region48
        $region47: #{tpu_custom_call.1} parent=31 // pred_region
          %295 = vst [vmem:[#allocation2] sm:$0x3] 0.0
        $region48: #{tpu_custom_call.1} parent=31 // pred_fallthru
          _
        %v296 = vld [vmem:[%s243] sm:$0x3]
        %v297 = vld [vmem:[%s243 + $0x2] sm:$0x3]
        %v298 = vld [vmem:[%s243 + $0x4] sm:$0x3]
        %v299 = vld [vmem:[%s243 + $0x6] sm:$0x3]
        %v300 = vld [vmem:[%s253] sm:$0x3]
        %v301 = vld [vmem:[%s253 + $0x2] sm:$0x3]
        %v302 = vld [vmem:[%s253 + $0x4] sm:$0x3]
        %s303 = sld [smem:[#allocation9]]
        %v304 = vstv %s303
        %v305 = vmul.f32 %v304, %v296
        %s306 = sld [smem:[#allocation9 + $0x80]]
        %v307 = vstv %s306
        %v308 = vmul.f32 %v307, %v297
        %v309 = vadd.f32 %v305, %v308
        %s310 = sld [smem:[#allocation9 + $0x100]]
        %v311 = vstv %s310
        %v312 = vmul.f32 %v311, %v298
        %v313 = vadd.f32 %v309, %v312
        %s314 = sld [smem:[#allocation9 + $0x180]]
        %v315 = vstv %s314
        %v316 = vmul.f32 %v315, %v299
        %v317 = vadd.f32 %v313, %v316
        %v318 = vmul.f32 %v300, %v317
        %v319 = vadd.f32 %v318, 0.0
        %v320 = vadd.f32 %v300, 0.0
        %s321 = sld [smem:[#allocation9 + $0x1]]
        %v322 = vstv %s321
        %v323 = vmul.f32 %v322, %v296
        %s324 = sld [smem:[#allocation9 + $0x81]]
        %v325 = vstv %s324
        %v326 = vmul.f32 %v325, %v297
        %v327 = vadd.f32 %v323, %v326
        %s328 = sld [smem:[#allocation9 + $0x101]]
        %v329 = vstv %s328
        %v330 = vmul.f32 %v329, %v298
        %v331 = vadd.f32 %v327, %v330
        %s332 = sld [smem:[#allocation9 + $0x181]]
        %v333 = vstv %s332
        %v334 = vmul.f32 %v333, %v299
        %v335 = vadd.f32 %v331, %v334
        %v336 = vmul.f32 %v301, %v335
        %v337 = vadd.f32 %v319, %v336
        %v338 = vadd.f32 %v320, %v301
        %s339 = sld [smem:[#allocation9 + $0x2]]
        %v340 = vstv %s339
        %v341 = vmul.f32 %v340, %v296
        %s342 = sld [smem:[#allocation9 + $0x82]]
        %v343 = vstv %s342
        %v344 = vmul.f32 %v343, %v297
        %v345 = vadd.f32 %v341, %v344
        %s346 = sld [smem:[#allocation9 + $0x102]]
        %v347 = vstv %s346
        %v348 = vmul.f32 %v347, %v298
        %v349 = vadd.f32 %v345, %v348
        %s350 = sld [smem:[#allocation9 + $0x182]]
        %v351 = vstv %s350
        %v352 = vmul.f32 %v351, %v299
        %v353 = vadd.f32 %v349, %v352
        %v354 = vmul.f32 %v302, %v353
        %v355 = vadd.f32 %v337, %v354
        %v356 = vadd.f32 %v338, %v302
        %v357 = vmax.f32 %v355, 0.0
        %v358 = vadd.f32 %v357, 1e-16
        %v359 = vlog2.pop %v358
        %v360 = vmul.f32 %v359, 0.6931472
        %v361 = vmul.f32 %v356, %v360
        %s362 = sadd.s32 %s27, %s29
        %s363 = sadd.s32 %s362, 1
        %s364 = smul.u32 %s363, 2
        %p365 = scmp.gt.s32.totalorder %s364, 2
        %p366 = scmp.le.s32.totalorder %s364, 2
        // Predicated region
        $region49: #{tpu_custom_call.1} parent=31 // pred_check
          %p367 = pneg %p366
        $region50: #{tpu_custom_call.1} parent=31 // pred_check_branch
          %369 = sbr.rel (%p367) target = $region52
        $region51: #{tpu_custom_call.1} parent=31 // pred_region
          %v370 = vld [vmem:[#allocation2] sm:$0x3]
          %v371 = vadd.f32 %v370, %v361
          %372 = vst [vmem:[#allocation2] sm:$0x3] %v371
        $region52: #{tpu_custom_call.1} parent=31 // pred_fallthru
          _
        // Predicated region
        $region53: #{tpu_custom_call.1} parent=31 // pred_check
          %p373 = pneg %p365
        $region54: #{tpu_custom_call.1} parent=31 // pred_check_branch
          %375 = sbr.rel (%p373) target = $region56
        $region55: #{tpu_custom_call.1} parent=31 // pred_region
          %v376 = vlaneseq
          %v377 = vshrl.u32 %v376, 7
          %s378 = smul.u32 %s362, 2
          %v379 = vstv %s378
          %v380 = vadd.s32 %v379, %v377
          %vm381 = vcmp.lt.s32.totalorder %v380, 2
          %v382 = vsel %vm381, %v361, 0.0
          %v383 = vld [vmem:[#allocation2] sm:$0x3]
          %v384 = vadd.f32 %v383, %v382
          %385 = vst [vmem:[#allocation2] sm:$0x3] %v384
        $region56: #{tpu_custom_call.1} parent=31 // pred_fallthru
          _
        %p386 = scmp.eq.s32.totalorder %s28, 1
        %p387 = pnand %p386, %p290
        %p388 = pneg %p387
        // Predicated region
        $region57: #{tpu_custom_call.1} parent=31 // pred_check
          _
        $region58: #{tpu_custom_call.1} parent=31 // pred_check_branch
          %390 = sbr.rel (%p387) target = $region60
        $region59: #{tpu_custom_call.1} parent=31 // pred_region
          %v391 = vld [vmem:[#allocation2] sm:$0x3]
          %vm392 = vcmask 1041408
          %v393 = vsel %vm392, %v391, 0.0
          %394 = vadd.xlane.f32.xlu0 %v393
          %v395 = vpop.xlane.xlu0 %394
          %v396 = vrot.slane %v395, 4
          %v397 = vadd.f32 %v395, %v396
          %v398 = vrot.slane %v397, 2
          %v399 = vadd.f32 %v397, %v398
          %v400 = vrot.slane %v399, 1
          %v401 = vadd.f32 %v399, %v400
          %s402 = vtos %v401
          %v403 = vstv %s402
          %404 = vst [vmem:[#allocation10] sm:$0xff] %v403
        $region60: #{tpu_custom_call.1} parent=31 // pred_fallthru
          _
        // Predicated region
        $region61: #{tpu_custom_call.1} parent=31 // pred_check
          %p405 = pneg %p148
        $region62: #{tpu_custom_call.1} parent=31 // pred_check_branch
          %407 = sbr.rel (%p405) target = $region64
        $region63: #{tpu_custom_call.1} parent=31 // pred_region
          %409 = vsyncadd [#allocation5], 0
          %s410 = smul.addr %s27, 8
          %s411 = scalar_lea.hbm %s3, %s410
          %s413 = sshll.u32 [#allocation10], 4
          %s414 = int_to_ptr.vmem [resolvable:$true] %s413
          %s415 = sshll.u32 %s411, 4
          %s416 = int_to_ptr.hbm [resolvable:$true] %s415
          %418 = dma.vmem_to_hbm [thread:$0]  %s414, 128, %s416, [#allocation5]
        $region64: #{tpu_custom_call.1} parent=31 // pred_fallthru
          _
        // Predicated region
        $region65: #{tpu_custom_call.1} parent=31 // pred_check
          %p419 = pneg %p148
        $region66: #{tpu_custom_call.1} parent=31 // pred_check_branch
          %421 = sbr.rel (%p419) target = $region68
        $region67: #{tpu_custom_call.1} parent=31 // pred_region
          %423 = dma.done [#allocation5], 128
        $region68: #{tpu_custom_call.1} parent=31 // pred_fallthru
          _
      $region32: #{tpu_custom_call.1} parent=5 // pred_fallthru
        _
      %p424 = scmp.le.s32.totalorder 2, %s17
      // Predicated region
      $region69: #{tpu_custom_call.1} parent=5 // pred_check
        %p425 = pneg %p424
      $region70: #{tpu_custom_call.1} parent=5 // pred_check_branch
        %427 = sbr.rel (%p425) target = $region72
      $region71: #{tpu_custom_call.1} parent=5 // pred_region
        %s428 = ssub.s32 %s17, 2
      $region72: #{tpu_custom_call.1} parent=5 // pred_fallthru
        _
    $region6: #{tpu_custom_call.1} parent=1 // loop_footer
      %s21 = sadd.s32 1, %s17
    $region7: #{tpu_custom_call.1} parent=1 // loop_footer_branch
      %16 = sbr.rel target = $region3
    $region8: #{tpu_custom_call.1} parent=1 // loop_exit
      _
    %429 = vsyncpa [#allocation4], 1
    %s430 = scalar_lea.sflag [#allocation4], 1
    %431 = vsyncpa %s430, 1
    %432 = vsyncpa [#allocation8], 1
    %s433 = scalar_lea.sflag [#allocation8], 1
    %434 = vsyncpa %s433, 1
    %435 = vsyncpa [#allocation5], 1
    %s436 = scalar_lea.sflag [#allocation5], 1
    %437 = vsyncpa %s436, 1
    %438 = vsyncpa [#allocation6], 1
    %s439 = scalar_lea.sflag [#allocation6], 1
    %440 = vsyncpa %s439, 1

</llo_original>
